<compile_context>
chip_gen: v7x
topology: tpu7x:2x2x1
jax: 0.10.0
libtpu: 0.0.40
codegen_flags: <defaults>
</compile_context>

<pallas_src>
import functools

import jax
import jax.numpy as jnp
from jax import lax
from jax.experimental import pallas as pl
from jax.experimental.pallas import tpu as pltpu


def _dice_kernel(logits_ref, labels_ref, out_ref, inter_acc, sump_acc,
                 *, hw, tile, tiles_per_split, ragged):
    s = pl.program_id(1)
    t = pl.program_id(2)

    @pl.when(t == 0)
    def _():
        inter_acc[...] = jnp.zeros_like(inter_acc)
        sump_acc[...] = jnp.zeros_like(sump_acc)

    x = logits_ref[0].astype(jnp.float32)            # (C, T) f32 compute (v5e-safe)
    lab = labels_ref[0].astype(jnp.int32)            # (1, T)
    num_classes = x.shape[0]

    # Ragged-tail mask: only emitted when HW % tile != 0 (tile selection
    # prefers exact divisors of HW, so this branch is normally absent).
    if ragged:
        col = (s * tiles_per_split + t) * tile + lax.broadcasted_iota(
            jnp.int32, (1, tile), 1)
        valid = col < hw                             # (1, T)
        x = jnp.where(valid, x, 0.0)                 # sanitize (NaN-safe before exp)
        lab = jnp.where(valid, lab, num_classes)     # out-of-range class -> no match
    else:
        valid = None

    # Numerically-stable softmax over the class (sublane) axis.
    # One reciprocal per column (EUP) instead of a per-element divide.
    m = jnp.max(x, axis=0, keepdims=True)            # (1, T)
    e = jnp.exp(x - m)                               # (C, T)
    r = pl.reciprocal(jnp.sum(e, axis=0, keepdims=True), approx=False)
    p = e * r                                        # (C, T)

    if valid is not None:
        p = jnp.where(valid, p, 0.0)

    # Intersection without materializing a float one-hot: (C,1) class iota,
    # compare broadcasts against the (1,T) labels.
    cls = lax.broadcasted_iota(jnp.int32, (num_classes, 1), 0)   # (C, 1)
    inter_acc[...] += jnp.where(cls == lab, p, 0.0)
    sump_acc[...] += p

    @pl.when(t == pl.num_programs(2) - 1)
    def _():
        out_ref[0, 0, :, 0:1] = jnp.sum(inter_acc[...], axis=-1, keepdims=True)
        out_ref[0, 0, :, 1:2] = jnp.sum(sump_acc[...], axis=-1, keepdims=True)


def _vmem_capacity_bytes(default=64 * 1024 * 1024):
    """Per-chip VMEM capacity (falls back to a v7x-safe 64 MiB)."""
    try:
        info = pltpu.get_tpu_info()
        cap = getattr(info, "vmem_capacity_bytes", None)
        if cap:
            return int(cap)
    except Exception:
        pass
    return default


def _pick_tile(hw, c, in_itemsize, lab_itemsize, budget_bytes):
    """Spatial tile width (lane axis), sized against the per-chip VMEM budget."""
    # Per spatial column: double-buffered logits + labels tiles, 2 f32
    # accumulators, and ~5 f32 (C, T) in-kernel temporaries (x, e, p, ...).
    per_col = 2 * c * in_itemsize + 2 * lab_itemsize + 2 * c * 4 + 5 * c * 4
    max_cols = max(128, budget_bytes // per_col)
    if hw <= max_cols:
        return int(hw)                               # one tile covers all of HW
    # Prefer a lane-aligned tile that evenly divides HW -> no ragged mask.
    t = (max_cols // 128) * 128
    while t >= 128:
        if hw % t == 0:
            return int(t)
        t -= 128
    # Fall back: largest lane-aligned tile; ragged tail handled in-kernel.
    return int(max(128, (max_cols // 128) * 128))


def dice_loss(y_pred, y_target, *, smooth=1e-8):
    """y_pred: [B, C, H, W] float logits; y_target: [B, H, W] int class indices."""
    B, C, H, W = y_pred.shape
    HW = H * W

    # Free views: no transpose, no pad, no dtype-widening pass over labels.
    logits = y_pred.reshape(B, C, HW)
    labels = y_target.reshape(B, 1, HW)

    vmem_cap = _vmem_capacity_bytes()
    budget_bytes = (vmem_cap * 3) // 4               # ~48 MiB v7x, ~96 MiB v5e/v6e
    vmem_limit = int(min(vmem_cap - 4 * 1024 * 1024,
                         budget_bytes + 16 * 1024 * 1024))

    tile = _pick_tile(HW, C, y_pred.dtype.itemsize, labels.dtype.itemsize,
                      budget_bytes)
    n_tiles = -(-HW // tile)
    ragged = (HW % tile) != 0

    # Feed both TensorCores on v7x when the batch axis can't (B == 1):
    # split the spatial reduction into two independent partials.
    n_splits = 2 if (B == 1 and n_tiles >= 2 and n_tiles % 2 == 0) else 1
    tiles_per_split = n_tiles // n_splits

    kernel = functools.partial(_dice_kernel, hw=HW, tile=tile,
                               tiles_per_split=tiles_per_split, ragged=ragged)

    partials = pl.pallas_call(
        kernel,
        out_shape=jax.ShapeDtypeStruct((B, n_splits, C, 2), jnp.float32),
        grid_spec=pltpu.PrefetchScalarGridSpec(
            num_scalar_prefetch=0,
            grid=(B, n_splits, tiles_per_split),
            in_specs=[
                pl.BlockSpec((1, C, tile),
                             lambda b, s, t: (b, 0, s * tiles_per_split + t)),
                pl.BlockSpec((1, 1, tile),
                             lambda b, s, t: (b, 0, s * tiles_per_split + t)),
            ],
            out_specs=pl.BlockSpec((1, 1, C, 2), lambda b, s, t: (b, s, 0, 0)),
            scratch_shapes=[
                pltpu.VMEM((C, tile), jnp.float32),   # intersection accumulator
                pltpu.VMEM((C, tile), jnp.float32),   # sum-of-probs accumulator
            ],
        ),
        compiler_params=pltpu.CompilerParams(
            dimension_semantics=("parallel", "parallel", "arbitrary"),
            vmem_limit_bytes=vmem_limit),
    )(logits, labels)

    # Tiny plain-JAX epilogue: reduce partials; the sum-of-onehot term of the
    # union is just the per-class pixel count, computed directly from labels.
    inter = jnp.sum(partials[..., 0], axis=(0, 1))    # (C,)
    sum_p = jnp.sum(partials[..., 1], axis=(0, 1))    # (C,)
    counts = jnp.bincount(y_target.reshape(-1), length=C).astype(jnp.float32)
    union = sum_p + counts
    dice = (2.0 * inter + smooth) / (union + smooth)
    return 1.0 - jnp.mean(dice)


def _dice_loss_ref(y_pred, y_target, smooth=1e-8):
    C = y_pred.shape[1]
    p = jax.nn.softmax(y_pred, axis=1)
    onehot = jnp.transpose(jax.nn.one_hot(y_target, C, dtype=p.dtype), (0, 3, 1, 2))
    dims = (0, 2, 3)
    inter = jnp.sum(p * onehot, axis=dims)
    union = jnp.sum(p, axis=dims) + jnp.sum(onehot, axis=dims)
    dice = (2.0 * inter + smooth) / (union + smooth)
    return 1.0 - jnp.mean(dice)


if __name__ == "__main__":
    B, C, H, W = 2, 4, 16, 16
    key = jax.random.PRNGKey(0)
    k1, k2 = jax.random.split(key)
    y_pred = jax.random.normal(k1, (B, C, H, W), dtype=jnp.float32)
    y_target = jax.random.randint(k2, (B, H, W), 0, C, dtype=jnp.int32)

    loss = dice_loss(y_pred, y_target, smooth=1e-8)
    loss = jax.block_until_ready(loss)

    ref = _dice_loss_ref(y_pred, y_target, smooth=1e-8)
    assert jnp.allclose(loss, ref, rtol=1e-5, atol=1e-5), (loss, ref)

    print("KERNEL_OK")
</pallas_src>

<mosaic_0001>
module attributes {stable_mosaic.version = 11 : i64} {
  func.func @_dice_kernel(%arg0: i32, %arg1: i32, %arg2: i32, %arg3: memref<1x4x256xf32, #tpu.memory_space<vmem>>, %arg4: memref<1x1x256xi32, #tpu.memory_space<vmem>>, %arg5: memref<1x1x4x2xf32, #tpu.memory_space<vmem>>, %arg6: memref<4x256xf32, #tpu.memory_space<vmem>>, %arg7: memref<4x256xf32, #tpu.memory_space<vmem>>) attributes {dimension_semantics = [#tpu.dimension_semantics<parallel>, #tpu.dimension_semantics<parallel>, #tpu.dimension_semantics<arbitrary>], iteration_bounds = array<i64: 2, 1, 1>, scalar_prefetch = 0 : i64, scratch_operands = 2 : i64, tpu.core_type = #tpu.core_type<tc>, window_params = [{transform_indices = @transform_0, window_bounds = array<i64: 1, 4, 256>}, {transform_indices = @transform_1, window_bounds = array<i64: 1, 1, 256>}, {transform_indices = @transform_2, window_bounds = array<i64: 1, 1, 4, 2>}]} {
    %c0_i32 = arith.constant 0 : i32
    %0 = arith.cmpi eq, %arg2, %c0_i32 : i32
    %1 = arith.extui %0 : i1 to i32
    %c0_i32_0 = arith.constant 0 : i32
    %2 = arith.cmpi ne, %1, %c0_i32_0 : i32
    scf.if %2 {
      %cst_18 = arith.constant 0.000000e+00 : f32
      %32 = vector.broadcast %cst_18 : f32 to vector<4x256xf32>
      %c0_19 = arith.constant 0 : index
      %c0_20 = arith.constant 0 : index
      %33 = vector.load %arg6[%c0_19, %c0_20] : memref<4x256xf32, #tpu.memory_space<vmem>>, vector<4x256xf32>
      tpu.vector_store %arg6[%c0_19, %c0_20], %32 {strides = array<i32>} : memref<4x256xf32, #tpu.memory_space<vmem>>, vector<4x256xf32>,
      %cst_21 = arith.constant 0.000000e+00 : f32
      %34 = vector.broadcast %cst_21 : f32 to vector<4x256xf32>
      %c0_22 = arith.constant 0 : index
      %c0_23 = arith.constant 0 : index
      %35 = vector.load %arg7[%c0_22, %c0_23] : memref<4x256xf32, #tpu.memory_space<vmem>>, vector<4x256xf32>
      tpu.vector_store %arg7[%c0_22, %c0_23], %34 {strides = array<i32>} : memref<4x256xf32, #tpu.memory_space<vmem>>, vector<4x256xf32>,
    } else {
    }
    %c0 = arith.constant 0 : index
    %c0_1 = arith.constant 0 : index
    %c0_2 = arith.constant 0 : index
    %3 = vector.load %arg3[%c0, %c0_1, %c0_2] : memref<1x4x256xf32, #tpu.memory_space<vmem>>, vector<1x4x256xf32>
    %4 = vector.shape_cast %3 : vector<1x4x256xf32> to vector<4x256xf32>
    %c0_3 = arith.constant 0 : index
    %c0_4 = arith.constant 0 : index
    %c0_5 = arith.constant 0 : index
    %5 = vector.load %arg4[%c0_3, %c0_4, %c0_5] : memref<1x1x256xi32, #tpu.memory_space<vmem>>, vector<1x1x256xi32>
    %6 = vector.shape_cast %5 : vector<1x1x256xi32> to vector<1x256xi32>
    %cst = arith.constant dense<0xFF800000> : vector<256xf32>
    %7 = vector.multi_reduction <maximumf>, %4, %cst [0] : vector<4x256xf32> to vector<256xf32>
    %8 = vector.shape_cast %7 : vector<256xf32> to vector<1x256xf32>
    %9 = vector.broadcast %8 : vector<1x256xf32> to vector<4x256xf32>
    %10 = arith.subf %4, %9 : vector<4x256xf32>
    %11 = math.exp %10 : vector<4x256xf32>
    %cst_6 = arith.constant dense<0.000000e+00> : vector<256xf32>
    %12 = vector.multi_reduction <add>, %11, %cst_6 [0] : vector<4x256xf32> to vector<256xf32>
    %13 = vector.shape_cast %12 : vector<256xf32> to vector<1x256xf32>
    %14 = tpu.reciprocal %13 : vector<1x256xf32> -> vector<1x256xf32>
    %15 = vector.broadcast %14 : vector<1x256xf32> to vector<4x256xf32>
    %16 = arith.mulf %11, %15 : vector<4x256xf32>
    %17 = tpu.iota {dimensions = array<i32: 0>} : vector<4x1xi32>
    %c0_7 = arith.constant 0 : index
    %c0_8 = arith.constant 0 : index
    %18 = vector.load %arg6[%c0_7, %c0_8] : memref<4x256xf32, #tpu.memory_space<vmem>>, vector<4x256xf32>
    %19 = vector.broadcast %17 : vector<4x1xi32> to vector<4x256xi32>
    %20 = vector.broadcast %6 : vector<1x256xi32> to vector<4x256xi32>
    %21 = arith.cmpi eq, %19, %20 : vector<4x256xi32>
    %cst_9 = arith.constant 0.000000e+00 : f32
    %22 = vector.broadcast %cst_9 : f32 to vector<4x256xf32>
    %23 = arith.select %21, %16, %22 : vector<4x256xi1>, vector<4x256xf32>
    %24 = arith.addf %18, %23 : vector<4x256xf32>
    %c0_10 = arith.constant 0 : index
    %c0_11 = arith.constant 0 : index
    %25 = vector.load %arg6[%c0_10, %c0_11] : memref<4x256xf32, #tpu.memory_space<vmem>>, vector<4x256xf32>
    tpu.vector_store %arg6[%c0_10, %c0_11], %24 {strides = array<i32>} : memref<4x256xf32, #tpu.memory_space<vmem>>, vector<4x256xf32>,
    %c0_12 = arith.constant 0 : index
    %c0_13 = arith.constant 0 : index
    %26 = vector.load %arg7[%c0_12, %c0_13] : memref<4x256xf32, #tpu.memory_space<vmem>>, vector<4x256xf32>
    %27 = arith.addf %26, %16 : vector<4x256xf32>
    %c0_14 = arith.constant 0 : index
    %c0_15 = arith.constant 0 : index
    %28 = vector.load %arg7[%c0_14, %c0_15] : memref<4x256xf32, #tpu.memory_space<vmem>>, vector<4x256xf32>
    tpu.vector_store %arg7[%c0_14, %c0_15], %27 {strides = array<i32>} : memref<4x256xf32, #tpu.memory_space<vmem>>, vector<4x256xf32>,
    %c0_i32_16 = arith.constant 0 : i32
    %29 = arith.cmpi eq, %arg2, %c0_i32_16 : i32
    %30 = arith.extui %29 : i1 to i32
    %c0_i32_17 = arith.constant 0 : i32
    %31 = arith.cmpi ne, %30, %c0_i32_17 : i32
    scf.if %31 {
      %c0_18 = arith.constant 0 : index
      %c0_19 = arith.constant 0 : index
      %32 = vector.load %arg6[%c0_18, %c0_19] : memref<4x256xf32, #tpu.memory_space<vmem>>, vector<4x256xf32>
      %cst_20 = arith.constant dense<0.000000e+00> : vector<4xf32>
      %33 = vector.multi_reduction <add>, %32, %cst_20 [1] : vector<4x256xf32> to vector<4xf32>
      %34 = vector.shape_cast %33 : vector<4xf32> to vector<4x1xf32>
      %c0_21 = arith.constant 0 : index
      %c0_22 = arith.constant 0 : index
      %c0_23 = arith.constant 0 : index
      %c0_24 = arith.constant 0 : index
      %35 = vector.load %arg5[%c0_21, %c0_22, %c0_23, %c0_24] : memref<1x1x4x2xf32, #tpu.memory_space<vmem>>, vector<1x1x4x1xf32>
      %36 = vector.shape_cast %35 : vector<1x1x4x1xf32> to vector<4x1xf32>
      %37 = vector.shape_cast %34 : vector<4x1xf32> to vector<1x1x4x1xf32>
      tpu.vector_store %arg5[%c0_21, %c0_22, %c0_23, %c0_24], %37 {strides = array<i32>} : memref<1x1x4x2xf32, #tpu.memory_space<vmem>>, vector<1x1x4x1xf32>,
      %c0_25 = arith.constant 0 : index
      %c0_26 = arith.constant 0 : index
      %38 = vector.load %arg7[%c0_25, %c0_26] : memref<4x256xf32, #tpu.memory_space<vmem>>, vector<4x256xf32>
      %cst_27 = arith.constant dense<0.000000e+00> : vector<4xf32>
      %39 = vector.multi_reduction <add>, %38, %cst_27 [1] : vector<4x256xf32> to vector<4xf32>
      %40 = vector.shape_cast %39 : vector<4xf32> to vector<4x1xf32>
      %c0_28 = arith.constant 0 : index
      %c0_29 = arith.constant 0 : index
      %c0_30 = arith.constant 0 : index
      %c1 = arith.constant 1 : index
      %41 = vector.load %arg5[%c0_28, %c0_29, %c0_30, %c1] : memref<1x1x4x2xf32, #tpu.memory_space<vmem>>, vector<1x1x4x1xf32>
      %42 = vector.shape_cast %41 : vector<1x1x4x1xf32> to vector<4x1xf32>
      %43 = vector.shape_cast %40 : vector<4x1xf32> to vector<1x1x4x1xf32>
      tpu.vector_store %arg5[%c0_28, %c0_29, %c0_30, %c1], %43 {strides = array<i32>} : memref<1x1x4x2xf32, #tpu.memory_space<vmem>>, vector<1x1x4x1xf32>,
    } else {
    }
    return
  }
  func.func @transform_0(%arg0: i32, %arg1: i32, %arg2: i32) -> (i32, i32, i32) {
    %c1_i32 = arith.constant 1 : i32
    %0 = arith.muli %arg1, %c1_i32 : i32
    %1 = arith.addi %0, %arg2 : i32
    %c0_i32 = arith.constant 0 : i32
    %c0_i32_0 = arith.constant 0 : i32
    return %arg0, %c0_i32, %1 : i32, i32, i32
  }
  func.func @transform_1(%arg0: i32, %arg1: i32, %arg2: i32) -> (i32, i32, i32) {
    %c1_i32 = arith.constant 1 : i32
    %0 = arith.muli %arg1, %c1_i32 : i32
    %1 = arith.addi %0, %arg2 : i32
    %c0_i32 = arith.constant 0 : i32
    %c0_i32_0 = arith.constant 0 : i32
    return %arg0, %c0_i32, %1 : i32, i32, i32
  }
  func.func @transform_2(%arg0: i32, %arg1: i32, %arg2: i32) -> (i32, i32, i32, i32) {
    %c0_i32 = arith.constant 0 : i32
    %c0_i32_0 = arith.constant 0 : i32
    %c0_i32_1 = arith.constant 0 : i32
    return %arg0, %arg1, %c0_i32, %c0_i32_0 : i32, i32, i32, i32
  }
}

</mosaic_0001>

<llo_original>
// kernel: tpu_custom_call.1
$region0: #{tpu_custom_call.1}
  #allocation0 [shape = 'u32[]', space=smem, size = 0x4, offset = 0x4, fixed_abs, tag = 'smem constant byte address 0x4 - core index']
  #allocation1 [shape = 'u32[144,128]{1,0:T(1,128)}', space=vmem, size = 0x12000, scoped, tag = 'internal scratch']
  #allocation2 [shape = 'f32[4,256]{1,0:T(4,128)}', space=vmem, size = 0x1000, scoped, tag = 'scratch operand']
  #allocation3 [shape = 'f32[4,256]{1,0:T(4,128)}', space=vmem, size = 0x1000, scoped, tag = 'scratch operand']
  %s0 = inlined_call_operand.hbm [shape: f32[2,4,256], index: 0, kind: input, shape index: {}]
  %s1 = inlined_call_operand.hbm [shape: s32[2,1,256], index: 1, kind: input, shape index: {}]
  %s2 = inlined_call_operand.vmem [shape: f32[2,1,4,2], index: 2, kind: output, shape index: {}]
  %s3 = sld [smem:[#allocation0]]
  $region57: #{tpu_custom_call.1} parent=0
    _
  %s5 = ssub.s32 1, %s3
  %s6 = scalar_select 0, %s5, %s3
  $region1: #{tpu_custom_call.1} parent=0
    #allocation4 [shape = 'u8[8192]{0}', space=vmem, size = 0x2000, scoped, tag = 'input window, operand 0']
    #allocation5 [shape = 's32[2]{0}', space=sflag, size = 0x8, scoped, tag = 'scoped memory for tpu_custom_call.1']
    #allocation6 [shape = 'u8[2048]{0}', space=vmem, size = 0x800, scoped, tag = 'input window, operand 1']
    #allocation7 [shape = 's32[2]{0}', space=sflag, size = 0x8, scoped, tag = 'scoped memory for tpu_custom_call.1']
    %7 = vsyncpa [#allocation5], 0
    %s8 = scalar_lea.sflag [#allocation5], 1
    %9 = vsyncpa %s8, 0
    %10 = vsyncpa [#allocation7], 0
    %s11 = scalar_lea.sflag [#allocation7], 1
    %12 = vsyncpa %s11, 0
    loop: start=0, step=1, limit=4
    $region2: #{tpu_custom_call.1} parent=1 // loop_pre_header
      _
    $region3: #{tpu_custom_call.1} parent=1 // loop_header
      %s14 = sphi 0, %s18
      %p15 = scmp.ge.s32.totalorder %s14, 4
      %s21 = sphi 0, %s40
      %s22 = sphi 0, %s36
      %s23 = sphi 0, %s32
      %s24 = sphi 0, %s21
      %s25 = sphi 0, %s22
      %s26 = sphi 0, %s23
      %s27 = sphi 0, %s24
      %s28 = sphi 0, %s25
      %s29 = sphi 0, %s26
      %s47 = sphi 0, %s49
      %s50 = sphi 0, %s47
      %s51 = sphi 0, %s50
      %s67 = sphi 0, %s51
      %s77 = sphi 0, %s79
      %s80 = sphi 0, %s77
      %s81 = sphi 0, %s80
      %s97 = sphi 0, %s81
      %s105 = sphi 0, %s107
      %s108 = sphi 0, %s105
      %s109 = sphi 0, %s108
      %s125 = sphi 0, %s109
    $region4: #{tpu_custom_call.1} parent=1 // loop_header_branch
      %17 = sbr.rel (%p15) target = $region8
    $region5: #{tpu_custom_call.1} parent=1 // loop_body
      %s19 = ssub.s32 %s14, 1
      %s20 = ssub.s32 %s14, 2
      %s30 = sadd.s32 1, %s23
      %p31 = scmp.ge.s32.totalorder %s30, 1
      %s32 = scalar_select %p31, 0, %s30
      %s33 = sadd.s32 1, %s22
      %s34 = scalar_select %p31, %s33, %s22
      %p35 = scmp.ge.s32.totalorder %s34, 1
      %s36 = scalar_select %p35, 0, %s34
      %s37 = sadd.s32 1, %s21
      %s38 = scalar_select %p35, %s37, %s21
      %p39 = scmp.ge.s32.totalorder %s38, 2
      %s40 = scalar_select %p39, 0, %s38
      %s41 = sadd.s32 %s22, %s23
      %s42 = sadd.s32 %s36, %s32
      %s43 = ssub.s32 %s21, %s40
      %s44 = ssub.s32 %s41, %s42
      %s45 = sor.u32 %s43, %s44
      %p46 = scmp.eq.s32.totalorder %s45, 0
      %s48 = sadd.s32 %s47, 1
      %s49 = scalar_select %p46, %s47, %s48
      %p52 = pneg %p46
      %p53 = scmp.eq.s32.totalorder %s14, 1
      %p54 = por %p52, %p53
      %p55 = scmp.ne.s32.totalorder %s47, %s50
      %p56 = scmp.eq.s32.totalorder %s14, 0
      %p57 = por %p55, %p56
      %p58 = scmp.ne.s32.totalorder %s47, %s50
      %p59 = scmp.eq.s32.totalorder %s19, 1
      %p60 = por %p58, %p59
      %p61 = scmp.ne.s32.totalorder %s50, %s51
      %p62 = scmp.eq.s32.totalorder %s19, 0
      %p63 = por %p61, %p62
      %p64 = scmp.ne.s32.totalorder %s50, %s51
      %p65 = scmp.eq.s32.totalorder %s20, 1
      %p66 = por %p64, %p65
      %p68 = scmp.ne.s32.totalorder %s51, %s67
      %p69 = scmp.eq.s32.totalorder %s20, 0
      %p70 = por %p68, %p69
      %s71 = sadd.s32 %s22, %s23
      %s72 = sadd.s32 %s36, %s32
      %s73 = ssub.s32 %s21, %s40
      %s74 = ssub.s32 %s71, %s72
      %s75 = sor.u32 %s73, %s74
      %p76 = scmp.eq.s32.totalorder %s75, 0
      %s78 = sadd.s32 %s77, 1
      %s79 = scalar_select %p76, %s77, %s78
      %p82 = pneg %p76
      %p83 = scmp.eq.s32.totalorder %s14, 1
      %p84 = por %p82, %p83
      %p85 = scmp.ne.s32.totalorder %s77, %s80
      %p86 = scmp.eq.s32.totalorder %s14, 0
      %p87 = por %p85, %p86
      %p88 = scmp.ne.s32.totalorder %s77, %s80
      %p89 = scmp.eq.s32.totalorder %s19, 1
      %p90 = por %p88, %p89
      %p91 = scmp.ne.s32.totalorder %s80, %s81
      %p92 = scmp.eq.s32.totalorder %s19, 0
      %p93 = por %p91, %p92
      %p94 = scmp.ne.s32.totalorder %s80, %s81
      %p95 = scmp.eq.s32.totalorder %s20, 1
      %p96 = por %p94, %p95
      %p98 = scmp.ne.s32.totalorder %s81, %s97
      %p99 = scmp.eq.s32.totalorder %s20, 0
      %p100 = por %p98, %p99
      %s101 = ssub.s32 %s21, %s40
      %s102 = ssub.s32 %s22, %s36
      %s103 = sor.u32 %s101, %s102
      %p104 = scmp.eq.s32.totalorder %s103, 0
      %s106 = sadd.s32 %s105, 1
      %s107 = scalar_select %p104, %s105, %s106
      %p110 = pneg %p104
      %p111 = scmp.eq.s32.totalorder %s14, 1
      %p112 = por %p110, %p111
      %p113 = scmp.ne.s32.totalorder %s105, %s108
      %p114 = scmp.eq.s32.totalorder %s14, 0
      %p115 = por %p113, %p114
      %p116 = scmp.ne.s32.totalorder %s105, %s108
      %p117 = scmp.eq.s32.totalorder %s19, 1
      %p118 = por %p116, %p117
      %p119 = scmp.ne.s32.totalorder %s108, %s109
      %p120 = scmp.eq.s32.totalorder %s19, 0
      %p121 = por %p119, %p120
      %p122 = scmp.ne.s32.totalorder %s108, %s109
      %p123 = scmp.eq.s32.totalorder %s20, 1
      %p124 = por %p122, %p123
      %p126 = scmp.ne.s32.totalorder %s109, %s125
      %p127 = scmp.eq.s32.totalorder %s20, 0
      %p128 = por %p126, %p127
      %p129 = scmp.le.s32.totalorder 1, %s14
      %p130 = scmp.lt.s32.totalorder %s14, 3
      %p131 = pnand %p129, %p130
      %p132 = pneg %p131
      // Predicated region
      $region9: #{tpu_custom_call.1} parent=5 // pred_check
        _
      $region10: #{tpu_custom_call.1} parent=5 // pred_check_branch
        %134 = sbr.rel (%p131) target = $region12
      $region11: #{tpu_custom_call.1} parent=5 // pred_region
        %s135 = ssub.s32 %s14, 1
      $region12: #{tpu_custom_call.1} parent=5 // pred_fallthru
        _
      %p136 = scmp.lt.s32.totalorder %s14, 2
      // Predicated region
      $region13: #{tpu_custom_call.1} parent=5 // pred_check
        %p137 = pneg %p136
      $region14: #{tpu_custom_call.1} parent=5 // pred_check_branch
        %139 = sbr.rel (%p137) target = $region16
      $region15: #{tpu_custom_call.1} parent=5 // pred_region
        // Predicated region
        $region17: #{tpu_custom_call.1} parent=15 // pred_check
          %p140 = pneg %p57
        $region18: #{tpu_custom_call.1} parent=15 // pred_check_branch
          %142 = sbr.rel (%p140) target = $region20
        $region19: #{tpu_custom_call.1} parent=15 // pred_region
          %s143 = sand.u32 %s47, 1
          %s144 = scalar_lea.sflag [#allocation5], %s143
          %s145 = sand.u32 %s47, 1
          %s146 = smul.addr %s145, 8
          %s147 = scalar_lea.vmem [#allocation4], %s146
          %s148 = sadd.s32 %s22, %s23
          %s149 = smul.u32 2, %s148
          %s151 = ssub.s32 128, 128
          %152 = vsyncadd %s144, %s151
          %s153 = smul.addr %s21, 2
          %s154 = sadd.s32 %s149, %s153
          %s155 = smul.addr %s154, 64
          %s156 = scalar_lea.hbm %s0, %s155
          %s158 = sshll.u32 %s147, 4
          %s159 = int_to_ptr.vmem [resolvable:$true] %s158
          %161 = dma.hbm_to_vmem [thread:$0]  %s156, 128, %s159, %s144
        $region20: #{tpu_custom_call.1} parent=15 // pred_fallthru
          _
        // Predicated region
        $region21: #{tpu_custom_call.1} parent=15 // pred_check
          %p162 = pneg %p87
        $region22: #{tpu_custom_call.1} parent=15 // pred_check_branch
          %164 = sbr.rel (%p162) target = $region24
        $region23: #{tpu_custom_call.1} parent=15 // pred_region
          %s165 = sand.u32 %s77, 1
          %s166 = scalar_lea.sflag [#allocation7], %s165
          %s167 = sand.u32 %s77, 1
          %s168 = smul.addr %s167, 2
          %s169 = scalar_lea.vmem [#allocation6], %s168
          %s170 = sadd.s32 %s22, %s23
          %s171 = smul.u32 2, %s170
          %s173 = ssub.s32 32, 32
          %174 = vsyncadd %s166, %s173
          %s175 = smul.addr %s21, 2
          %s176 = sadd.s32 %s171, %s175
          %s177 = smul.addr %s176, 16
          %s178 = scalar_lea.hbm %s1, %s177
          %s180 = sshll.u32 %s169, 4
          %s181 = int_to_ptr.vmem [resolvable:$true] %s180
          %183 = dma.hbm_to_vmem [thread:$0]  %s178, 32, %s181, %s166
        $region24: #{tpu_custom_call.1} parent=15 // pred_fallthru
          _
      $region16: #{tpu_custom_call.1} parent=5 // pred_fallthru
        _
      %p184 = scmp.le.s32.totalorder 1, %s14
      %p185 = scmp.lt.s32.totalorder %s14, 3
      %p186 = pnand %p184, %p185
      %p187 = pneg %p186
      // Predicated region
      $region25: #{tpu_custom_call.1} parent=5 // pred_check
        _
      $region26: #{tpu_custom_call.1} parent=5 // pred_check_branch
        %189 = sbr.rel (%p186) target = $region28
      $region27: #{tpu_custom_call.1} parent=5 // pred_region
        %s190 = ssub.s32 %s14, 1
        %s191 = sand.u32 %s50, 1
        %s192 = scalar_lea.sflag [#allocation5], %s191
        %s193 = sand.u32 %s50, 1
        %s194 = smul.addr %s193, 8
        %s195 = scalar_lea.vmem [#allocation4], %s194
        // Predicated region
        $region29: #{tpu_custom_call.1} parent=27 // pred_check
          %p196 = pneg %p63
        $region30: #{tpu_custom_call.1} parent=27 // pred_check_branch
          %198 = sbr.rel (%p196) target = $region32
        $region31: #{tpu_custom_call.1} parent=27 // pred_region
          %199 = dma.done %s192, 128
        $region32: #{tpu_custom_call.1} parent=27 // pred_fallthru
          _
        %s200 = sand.u32 %s80, 1
        %s201 = scalar_lea.sflag [#allocation7], %s200
        %s202 = sand.u32 %s80, 1
        %s203 = smul.addr %s202, 2
        %s204 = scalar_lea.vmem [#allocation6], %s203
        // Predicated region
        $region33: #{tpu_custom_call.1} parent=27 // pred_check
          %p205 = pneg %p93
        $region34: #{tpu_custom_call.1} parent=27 // pred_check_branch
          %207 = sbr.rel (%p205) target = $region36
        $region35: #{tpu_custom_call.1} parent=27 // pred_region
          %208 = dma.done %s201, 32
        $region36: #{tpu_custom_call.1} parent=27 // pred_fallthru
          _
        %s209 = sand.u32 %s50, 1
        %s210 = scalar_lea.sflag [#allocation5], %s209
        %s211 = sand.u32 %s50, 1
        %s212 = smul.addr %s211, 8
        %s213 = scalar_lea.vmem [#allocation4], %s212
        %p214 = pneg %p63
        %p215 = pneg %p60
        %s216 = sand.u32 %s80, 1
        %s217 = scalar_lea.sflag [#allocation7], %s216
        %s218 = sand.u32 %s80, 1
        %s219 = smul.addr %s218, 2
        %s220 = scalar_lea.vmem [#allocation6], %s219
        %p221 = pneg %p93
        %p222 = pneg %p90
        %p223 = pneg %p121
        %p224 = pneg %p118
        %p225 = scmp.lt.s32.totalorder %s24, 1
        %s226 = scalar_select %p225, %s24, 1
        %p227 = scmp.lt.s32.totalorder %s25, 0
        %s228 = scalar_select %p227, %s25, 0
        %s229 = sadd.s32 %s228, %s226
        %s230 = smul.addr %s229, 4
        %s231 = scalar_lea.vmem %s2, %s230
        %s232 = sadd.s32 %s25, %s26
        %s233 = smul.u32 2, %s232
        %s234 = sadd.s32 %s25, %s26
        %s235 = smul.u32 2, %s234
        %p236 = scmp.lt.s32.totalorder %s24, 1
        %s237 = scalar_select %p236, %s24, 1
        %p238 = scmp.lt.s32.totalorder %s25, 0
        %s239 = scalar_select %p238, %s25, 0
        %s240 = sadd.s32 %s239, %s237
        %s241 = smul.addr %s240, 4
        %s242 = scalar_lea.vmem %s2, %s241
        %p243 = scmp.eq.s32.totalorder %s26, 0
        // Predicated region
        $region37: #{tpu_custom_call.1} parent=27 // pred_check
          %p244 = pneg %p243
        $region38: #{tpu_custom_call.1} parent=27 // pred_check_branch
          %246 = sbr.rel (%p244) target = $region40
        $region39: #{tpu_custom_call.1} parent=27 // pred_region
          %247 = vst [vmem:[#allocation2] sm:$0xff] 0.0
          %248 = vst [vmem:[#allocation3] sm:$0xff] 0.0
        $region40: #{tpu_custom_call.1} parent=27 // pred_fallthru
          _
        %v249 = vld [vmem:[%s195] sm:$0xff]
        %v250 = vld [vmem:[%s204] sm:$0x3]
        %v252 = vcombine.high %v249, %v249
        %vm254 = vcmask 1043456
        %v255 = vsel %vm254, %v249, -inf
        %v256 = vrot.slane %v255, 4
        %v257 = vmax.f32 %v255, %v256
        %v258 = vrot.slane %v257, 2
        %v259 = vmax.f32 %v257, %v258
        %v260 = vrot.slane %v259, 1
        %v261 = vmax.f32 %v259, %v260
        %v262 = vsel %vm254, %v252, -inf
        %v263 = vrot.slane %v262, 4
        %v264 = vmax.f32 %v262, %v263
        %v265 = vrot.slane %v264, 2
        %v266 = vmax.f32 %v264, %v265
        %v267 = vrot.slane %v266, 1
        %v268 = vmax.f32 %v266, %v267
        %v271 = vcombine.low %v261, %v268
        %v273 = vsub.f32 %v249, %v271
        %v274 = vmul.f32 %v273, 1.442695
        %v275 = vpow.pop %v274
        %v277 = vcombine.high %v275, %v275
        %v279 = vsel %vm254, %v275, 0.0
        %v280 = vrot.slane %v279, 4
        %v281 = vadd.f32 %v279, %v280
        %v282 = vrot.slane %v281, 2
        %v283 = vadd.f32 %v281, %v282
        %v284 = vrot.slane %v283, 1
        %v285 = vadd.f32 %v283, %v284
        %v286 = vsel %vm254, %v277, 0.0
        %v287 = vrot.slane %v286, 4
        %v288 = vadd.f32 %v286, %v287
        %v289 = vrot.slane %v288, 2
        %v290 = vadd.f32 %v288, %v289
        %v291 = vrot.slane %v290, 1
        %v292 = vadd.f32 %v290, %v291
        %v293 = vrcp.pop %v285
        %v294 = vrcp.pop %v292
        %v297 = vcombine.low %v293, %v294
        %v299 = vmul.f32 %v275, %v297
        %v300 = vlaneseq
        %v301 = vshrl.u32 %v300, 7
        %v302 = vld [vmem:[#allocation2] sm:$0xff]
        %v303 = vlaneseq
        %v304 = vshrl.u32 %v303, 7
        %v305 = vsub.s32 0, %v304
        %v306 = vrot.slane %v250, %v305
        %v307 = vlaneseq
        %v308 = vshrl.u32 %v307, 7
        %v309 = vsub.s32 1, %v308
        %v310 = vrot.slane %v250, %v309
        %vm311 = vcmp.eq.s32.totalorder %v301, %v306
        %vm312 = vcmp.eq.s32.totalorder %v301, %v310
        %v314 = vcombine.high %v299, %v299
        %v316 = vsel %vm311, %v299, 0.0
        %v317 = vsel %vm312, %v314, 0.0
        %v320 = vcombine.low %v316, %v317
        %v322 = vadd.f32 %v302, %v320
        %323 = vst [vmem:[#allocation2] sm:$0xff] %v322
        %v324 = vld [vmem:[#allocation3] sm:$0xff]
        %v325 = vadd.f32 %v324, %v299
        %326 = vst [vmem:[#allocation3] sm:$0xff] %v325
        // Predicated region
        $region41: #{tpu_custom_call.1} parent=27 // pred_check
          %p327 = pneg %p243
        $region42: #{tpu_custom_call.1} parent=27 // pred_check_branch
          %329 = sbr.rel (%p327) target = $region44
        $region43: #{tpu_custom_call.1} parent=27 // pred_region
          %v330 = vld [vmem:[#allocation2] sm:$0xff]
          %v332 = vcombine.high %v330, %v330
          %v334 = vsel %vm254, %v330, 0.0
          %v335 = vsel %vm254, %v332, 0.0
          %v336 = vadd.f32 %v334, %v335
          %337 = vadd.xlane.f32.xlu0 %v336
          %v338 = vpop.xlane.xlu0 %337
          %vm339 = vcmask 3072
          %340 = vst.msk [vmem:[%s242] sm:$0xf] %vm339, %v338
          %v341 = vld [vmem:[#allocation3] sm:$0xff]
          %v343 = vcombine.high %v341, %v341
          %v345 = vsel %vm254, %v341, 0.0
          %v346 = vsel %vm254, %v343, 0.0
          %v347 = vadd.f32 %v345, %v346
          %348 = vadd.xlane.f32.xlu0 %v347
          %v349 = vpop.xlane.xlu0 %348
          %vm350 = vcmask 11272
          %351 = vst.msk [vmem:[%s242] sm:$0xf] %vm350, %v349
        $region44: #{tpu_custom_call.1} parent=27 // pred_fallthru
          _
        %p352 = scmp.lt.s32.totalorder %s24, 1
        %s353 = scalar_select %p352, %s24, 1
        %p354 = scmp.lt.s32.totalorder %s25, 0
        %s355 = scalar_select %p354, %s25, 0
        %s356 = sadd.s32 %s355, %s353
        %s357 = smul.addr %s356, 4
        %s358 = scalar_lea.vmem %s2, %s357
        // Predicated region
        $region45: #{tpu_custom_call.1} parent=27 // pred_check
          %p359 = pneg %p118
        $region46: #{tpu_custom_call.1} parent=27 // pred_check_branch
          %361 = sbr.rel (%p359) target = $region48
        $region47: #{tpu_custom_call.1} parent=27 // pred_region
          _
        $region48: #{tpu_custom_call.1} parent=27 // pred_fallthru
          _
      $region28: #{tpu_custom_call.1} parent=5 // pred_fallthru
        _
      %p362 = scmp.le.s32.totalorder 2, %s14
      // Predicated region
      $region49: #{tpu_custom_call.1} parent=5 // pred_check
        %p363 = pneg %p362
      $region50: #{tpu_custom_call.1} parent=5 // pred_check_branch
        %365 = sbr.rel (%p363) target = $region52
      $region51: #{tpu_custom_call.1} parent=5 // pred_region
        %s366 = ssub.s32 %s14, 2
        // Predicated region
        $region53: #{tpu_custom_call.1} parent=51 // pred_check
          %p367 = pneg %p124
        $region54: #{tpu_custom_call.1} parent=51 // pred_check_branch
          %369 = sbr.rel (%p367) target = $region56
        $region55: #{tpu_custom_call.1} parent=51 // pred_region
          %p370 = scmp.lt.s32.totalorder %s27, 1
          %s371 = scalar_select %p370, %s27, 1
          %p372 = scmp.lt.s32.totalorder %s28, 0
          %s373 = scalar_select %p372, %s28, 0
          %s374 = sadd.s32 %s373, %s371
          %s375 = smul.addr %s374, 4
          %s376 = scalar_lea.vmem %s2, %s375
        $region56: #{tpu_custom_call.1} parent=51 // pred_fallthru
          _
      $region52: #{tpu_custom_call.1} parent=5 // pred_fallthru
        _
    $region6: #{tpu_custom_call.1} parent=1 // loop_footer
      %s18 = sadd.s32 1, %s14
    $region7: #{tpu_custom_call.1} parent=1 // loop_footer_branch
      %13 = sbr.rel target = $region3
    $region8: #{tpu_custom_call.1} parent=1 // loop_exit
      _
    %377 = vsyncpa [#allocation5], 1
    %s378 = scalar_lea.sflag [#allocation5], 1
    %379 = vsyncpa %s378, 1
    %380 = vsyncpa [#allocation7], 1
    %s381 = scalar_lea.sflag [#allocation7], 1
    %382 = vsyncpa %s381, 1

</llo_original>
